<compile_context>
chip_gen: v5e
topology: v5e:2x2
jax: 0.10.0
libtpu: 0.0.40
codegen_flags: <defaults>
</compile_context>

<pallas_src>
import functools

import jax
import jax.numpy as jnp
from jax.experimental import pallas as pl
from jax.experimental.pallas import tpu as pltpu


def ppo_kernel(x_ref, w1_ref, b1_ref, w2_ref, b2_ref, w3_ref, b3_ref, o_ref):
    """One batch tile: 3 MXU matmuls (bf16 operands, f32 accum) + ReLU + exact softmax."""
    x = x_ref[...].astype(jnp.bfloat16)

    # Linear 1 + ReLU (bias add / ReLU in f32)
    h1 = jnp.dot(x, w1_ref[...], preferred_element_type=jnp.float32) + b1_ref[...]
    h1 = jnp.maximum(h1, 0.0)

    # Linear 2 + ReLU
    h2 = jnp.dot(h1.astype(jnp.bfloat16), w2_ref[...],
                 preferred_element_type=jnp.float32) + b2_ref[...]
    h2 = jnp.maximum(h2, 0.0)

    # Linear 3 (logits); padded columns carry a -1e30 f32 bias -> exactly 0 probability.
    logits = jnp.dot(h2.astype(jnp.bfloat16), w3_ref[...],
                     preferred_element_type=jnp.float32) + b3_ref[...]

    # Numerically stable softmax over the last dim, exact normalization (matches nn.Softmax).
    m = jnp.max(logits, axis=-1, keepdims=True)
    e = jnp.exp(logits - m)
    denom = jnp.sum(e, axis=-1, keepdims=True)
    o_ref[...] = (e / denom).astype(o_ref.dtype)


def _round_up(n, m):
    return ((n + m - 1) // m) * m


def _pad2d(a, rows, cols, fill=0.0):
    return jnp.pad(
        a,
        ((0, rows - a.shape[0]), (0, cols - a.shape[1])),
        constant_values=jnp.asarray(fill, a.dtype),
    )


def prepare_params(w1, b1, w2, b2, w3, b3):
    """Pad every feature dim to a multiple of 128 lanes and cast weights to bf16.

    Run ONCE at init / param update; the per-step forward only pads the activations.
    Biases stay f32; the last bias pads with -1e30 to kill padded softmax columns.
    """
    LANE = 128
    F, H1 = w1.shape
    H2 = w2.shape[1]
    O = w3.shape[1]
    Fp, H1p, H2p, Op = (_round_up(d, LANE) for d in (F, H1, H2, O))

    w1p = _pad2d(w1, Fp, H1p).astype(jnp.bfloat16)
    w2p = _pad2d(w2, H1p, H2p).astype(jnp.bfloat16)
    w3p = _pad2d(w3, H2p, Op).astype(jnp.bfloat16)
    b1p = _pad2d(b1.reshape(1, -1).astype(jnp.float32), 1, H1p)
    b2p = _pad2d(b2.reshape(1, -1).astype(jnp.float32), 1, H2p)
    b3p = _pad2d(b3.reshape(1, -1).astype(jnp.float32), 1, Op, fill=-1e30)
    return w1p, b1p, w2p, b2p, w3p, b3p


@functools.partial(jax.jit, static_argnames=("out_dim", "block_b"))
def ppo_forward(x, w1p, b1p, w2p, b2p, w3p, b3p, *, out_dim, block_b=512):
    B, _ = x.shape
    Fp, H1p = w1p.shape
    H2p = w2p.shape[1]
    Op = w3p.shape[1]

    # Batch tile: multiple of 8 sublanes, capped at block_b, and chosen so the grid has at
    # least 2 programs whenever B > 8 -> both v7x TensorCores get work ("parallel" axis).
    tm = min(block_b, max(8, _round_up(pl.cdiv(B, 2), 8)))
    Bp = _round_up(B, tm)

    xp = _pad2d(x, Bp, Fp)

    grid = (Bp // tm,)
    flops = 2 * Bp * (Fp * H1p + H1p * H2p + H2p * Op)
    bytes_accessed = (
        4 * (Bp * Fp + Bp * Op + H1p + H2p + Op)            # f32 activations + biases
        + 2 * (Fp * H1p + H1p * H2p + H2p * Op)             # bf16 weights
    )

    out_p = pl.pallas_call(
        ppo_kernel,
        out_shape=jax.ShapeDtypeStruct((Bp, Op), jnp.float32),
        grid=grid,
        in_specs=[
            pl.BlockSpec((tm, Fp), lambda i: (i, 0)),    # x: streamed per batch tile
            pl.BlockSpec((Fp, H1p), lambda i: (0, 0)),   # weights/biases: VMEM-resident
            pl.BlockSpec((1, H1p), lambda i: (0, 0)),
            pl.BlockSpec((H1p, H2p), lambda i: (0, 0)),
            pl.BlockSpec((1, H2p), lambda i: (0, 0)),
            pl.BlockSpec((H2p, Op), lambda i: (0, 0)),
            pl.BlockSpec((1, Op), lambda i: (0, 0)),
        ],
        out_specs=pl.BlockSpec((tm, Op), lambda i: (i, 0)),
        compiler_params=pltpu.CompilerParams(dimension_semantics=("parallel",)),
        cost_estimate=pl.CostEstimate(
            flops=flops, transcendentals=Bp * Op, bytes_accessed=bytes_accessed
        ),
    )(xp, w1p, b1p, w2p, b2p, w3p, b3p)

    return out_p[:B, :out_dim]


def init_params(key, in_features, out_dim, hidden_layer):
    """Deterministic init mimicking nn.Linear's U(-1/sqrt(fan_in), 1/sqrt(fan_in))."""
    h2 = hidden_layer // 2
    ks = jax.random.split(key, 6)

    def lin(kw, kb, fan_in, fan_out):
        bound = 1.0 / jnp.sqrt(jnp.float32(fan_in))
        w = jax.random.uniform(kw, (fan_in, fan_out), jnp.float32, -bound, bound)
        b = jax.random.uniform(kb, (1, fan_out), jnp.float32, -bound, bound)
        return w, b

    w1, b1 = lin(ks[0], ks[1], in_features, hidden_layer)
    w2, b2 = lin(ks[2], ks[3], hidden_layer, h2)
    w3, b3 = lin(ks[4], ks[5], h2, out_dim)
    return w1, b1, w2, b2, w3, b3


if __name__ == "__main__":
    # Small shapes consistent with the module's forward: x is [batch, in_features].
    B, in_features, hidden_layer, out_dim = 8, 32, 64, 8

    key = jax.random.PRNGKey(0)
    kx, kp = jax.random.split(key)
    x = jax.random.normal(kx, (B, in_features), jnp.float32)
    raw_params = init_params(kp, in_features, out_dim, hidden_layer)

    # One-time padding + bf16 weight cast (hoisted out of the forward path).
    padded_params = prepare_params(*raw_params)

    out = ppo_forward(x, *padded_params, out_dim=out_dim)
    out = jax.block_until_ready(out)

    # Sanity: exact-division softmax -> rows sum to 1 within float rounding.
    assert out.shape == (B, out_dim)
    assert jnp.allclose(jnp.sum(out, axis=-1), 1.0, atol=1e-5)

    # Cross-check against a pure-JAX reference using the same bf16-operand / f32-accumulate
    # matmul convention as the kernel.
    w1, b1, w2, b2, w3, b3 = raw_params

    def mm(a, w):
        return jnp.dot(a.astype(jnp.bfloat16), w.astype(jnp.bfloat16),
                       preferred_element_type=jnp.float32)

    h1 = jnp.maximum(mm(x, w1) + b1, 0.0)
    h2 = jnp.maximum(mm(h1, w2) + b2, 0.0)
    ref = jax.nn.softmax(mm(h2, w3) + b3, axis=-1)
    assert jnp.allclose(out, ref, atol=2e-3, rtol=2e-3)

    print("KERNEL_OK")
</pallas_src>

<mosaic_0001>
module attributes {stable_mosaic.version = 11 : i64} {
  func.func @ppo_kernel(%arg0: i32, %arg1: memref<8x128xf32, #tpu.memory_space<vmem>>, %arg2: memref<128x128xbf16, #tpu.memory_space<vmem>>, %arg3: memref<1x128xf32, #tpu.memory_space<vmem>>, %arg4: memref<128x128xbf16, #tpu.memory_space<vmem>>, %arg5: memref<1x128xf32, #tpu.memory_space<vmem>>, %arg6: memref<128x128xbf16, #tpu.memory_space<vmem>>, %arg7: memref<1x128xf32, #tpu.memory_space<vmem>>, %arg8: memref<8x128xf32, #tpu.memory_space<vmem>>) attributes {dimension_semantics = [#tpu.dimension_semantics<parallel>], iteration_bounds = array<i64: 1>, scalar_prefetch = 0 : i64, scratch_operands = 0 : i64, tpu.core_type = #tpu.core_type<tc>, window_params = [{transform_indices = @transform_0, window_bounds = array<i64: 8, 128>}, {pipeline_mode = #tpu.pipeline_mode<synchronous>, transform_indices = @transform_1, window_bounds = array<i64: 128, 128>}, {pipeline_mode = #tpu.pipeline_mode<synchronous>, transform_indices = @transform_2, window_bounds = array<i64: 1, 128>}, {pipeline_mode = #tpu.pipeline_mode<synchronous>, transform_indices = @transform_3, window_bounds = array<i64: 128, 128>}, {pipeline_mode = #tpu.pipeline_mode<synchronous>, transform_indices = @transform_4, window_bounds = array<i64: 1, 128>}, {pipeline_mode = #tpu.pipeline_mode<synchronous>, transform_indices = @transform_5, window_bounds = array<i64: 128, 128>}, {pipeline_mode = #tpu.pipeline_mode<synchronous>, transform_indices = @transform_6, window_bounds = array<i64: 1, 128>}, {transform_indices = @transform_7, window_bounds = array<i64: 8, 128>}]} {
    %c0 = arith.constant 0 : index
    %c0_0 = arith.constant 0 : index
    %0 = vector.load %arg1[%c0, %c0_0] : memref<8x128xf32, #tpu.memory_space<vmem>>, vector<8x128xf32>
    %1 = arith.truncf %0 : vector<8x128xf32> to vector<8x128xbf16>
    %c0_1 = arith.constant 0 : index
    %c0_2 = arith.constant 0 : index
    %2 = vector.load %arg2[%c0_1, %c0_2] : memref<128x128xbf16, #tpu.memory_space<vmem>>, vector<128x128xbf16>
    %cst = arith.constant dense<0.000000e+00> : vector<8x128xf32>
    %3 = tpu.matmul %1, %2, %cst {dimension_numbers = #tpu.dot_dimension_numbers<[1], [0], [0], [1], [0, 0, 1, 1], [], []>} : vector<8x128xbf16>, vector<128x128xbf16>, vector<8x128xf32> -> vector<8x128xf32>
    %c0_3 = arith.constant 0 : index
    %c0_4 = arith.constant 0 : index
    %4 = vector.load %arg3[%c0_3, %c0_4] : memref<1x128xf32, #tpu.memory_space<vmem>>, vector<1x128xf32>
    %5 = vector.broadcast %4 : vector<1x128xf32> to vector<8x128xf32>
    %6 = arith.addf %3, %5 : vector<8x128xf32>
    %cst_5 = arith.constant 0.000000e+00 : f32
    %7 = vector.broadcast %cst_5 : f32 to vector<8x128xf32>
    %8 = arith.maximumf %6, %7 : vector<8x128xf32>
    %9 = arith.truncf %8 : vector<8x128xf32> to vector<8x128xbf16>
    %c0_6 = arith.constant 0 : index
    %c0_7 = arith.constant 0 : index
    %10 = vector.load %arg4[%c0_6, %c0_7] : memref<128x128xbf16, #tpu.memory_space<vmem>>, vector<128x128xbf16>
    %cst_8 = arith.constant dense<0.000000e+00> : vector<8x128xf32>
    %11 = tpu.matmul %9, %10, %cst_8 {dimension_numbers = #tpu.dot_dimension_numbers<[1], [0], [0], [1], [0, 0, 1, 1], [], []>} : vector<8x128xbf16>, vector<128x128xbf16>, vector<8x128xf32> -> vector<8x128xf32>
    %c0_9 = arith.constant 0 : index
    %c0_10 = arith.constant 0 : index
    %12 = vector.load %arg5[%c0_9, %c0_10] : memref<1x128xf32, #tpu.memory_space<vmem>>, vector<1x128xf32>
    %13 = vector.broadcast %12 : vector<1x128xf32> to vector<8x128xf32>
    %14 = arith.addf %11, %13 : vector<8x128xf32>
    %cst_11 = arith.constant 0.000000e+00 : f32
    %15 = vector.broadcast %cst_11 : f32 to vector<8x128xf32>
    %16 = arith.maximumf %14, %15 : vector<8x128xf32>
    %17 = arith.truncf %16 : vector<8x128xf32> to vector<8x128xbf16>
    %c0_12 = arith.constant 0 : index
    %c0_13 = arith.constant 0 : index
    %18 = vector.load %arg6[%c0_12, %c0_13] : memref<128x128xbf16, #tpu.memory_space<vmem>>, vector<128x128xbf16>
    %cst_14 = arith.constant dense<0.000000e+00> : vector<8x128xf32>
    %19 = tpu.matmul %17, %18, %cst_14 {dimension_numbers = #tpu.dot_dimension_numbers<[1], [0], [0], [1], [0, 0, 1, 1], [], []>} : vector<8x128xbf16>, vector<128x128xbf16>, vector<8x128xf32> -> vector<8x128xf32>
    %c0_15 = arith.constant 0 : index
    %c0_16 = arith.constant 0 : index
    %20 = vector.load %arg7[%c0_15, %c0_16] : memref<1x128xf32, #tpu.memory_space<vmem>>, vector<1x128xf32>
    %21 = vector.broadcast %20 : vector<1x128xf32> to vector<8x128xf32>
    %22 = arith.addf %19, %21 : vector<8x128xf32>
    %cst_17 = arith.constant dense<0xFF800000> : vector<8xf32>
    %23 = vector.multi_reduction <maximumf>, %22, %cst_17 [1] : vector<8x128xf32> to vector<8xf32>
    %24 = vector.shape_cast %23 : vector<8xf32> to vector<8x1xf32>
    %25 = vector.broadcast %24 : vector<8x1xf32> to vector<8x128xf32>
    %26 = arith.subf %22, %25 : vector<8x128xf32>
    %27 = math.exp %26 : vector<8x128xf32>
    %cst_18 = arith.constant dense<0.000000e+00> : vector<8xf32>
    %28 = vector.multi_reduction <add>, %27, %cst_18 [1] : vector<8x128xf32> to vector<8xf32>
    %29 = vector.shape_cast %28 : vector<8xf32> to vector<8x1xf32>
    %30 = vector.broadcast %29 : vector<8x1xf32> to vector<8x128xf32>
    %31 = arith.divf %27, %30 : vector<8x128xf32>
    %c0_19 = arith.constant 0 : index
    %c0_20 = arith.constant 0 : index
    %32 = vector.load %arg8[%c0_19, %c0_20] : memref<8x128xf32, #tpu.memory_space<vmem>>, vector<8x128xf32>
    tpu.vector_store %arg8[%c0_19, %c0_20], %31 {strides = array<i32>} : memref<8x128xf32, #tpu.memory_space<vmem>>, vector<8x128xf32>,
    return
  }
  func.func @transform_0(%arg0: i32) -> (i32, i32) {
    %c0_i32 = arith.constant 0 : i32
    %c0_i32_0 = arith.constant 0 : i32
    return %arg0, %c0_i32 : i32, i32
  }
  func.func @transform_1(%arg0: i32) -> (i32, i32) {
    %c0_i32 = arith.constant 0 : i32
    %c0_i32_0 = arith.constant 0 : i32
    %c0_i32_1 = arith.constant 0 : i32
    return %c0_i32, %c0_i32_0 : i32, i32
  }
  func.func @transform_2(%arg0: i32) -> (i32, i32) {
    %c0_i32 = arith.constant 0 : i32
    %c0_i32_0 = arith.constant 0 : i32
    %c0_i32_1 = arith.constant 0 : i32
    return %c0_i32, %c0_i32_0 : i32, i32
  }
  func.func @transform_3(%arg0: i32) -> (i32, i32) {
    %c0_i32 = arith.constant 0 : i32
    %c0_i32_0 = arith.constant 0 : i32
    %c0_i32_1 = arith.constant 0 : i32
    return %c0_i32, %c0_i32_0 : i32, i32
  }
  func.func @transform_4(%arg0: i32) -> (i32, i32) {
    %c0_i32 = arith.constant 0 : i32
    %c0_i32_0 = arith.constant 0 : i32
    %c0_i32_1 = arith.constant 0 : i32
    return %c0_i32, %c0_i32_0 : i32, i32
  }
  func.func @transform_5(%arg0: i32) -> (i32, i32) {
    %c0_i32 = arith.constant 0 : i32
    %c0_i32_0 = arith.constant 0 : i32
    %c0_i32_1 = arith.constant 0 : i32
    return %c0_i32, %c0_i32_0 : i32, i32
  }
  func.func @transform_6(%arg0: i32) -> (i32, i32) {
    %c0_i32 = arith.constant 0 : i32
    %c0_i32_0 = arith.constant 0 : i32
    %c0_i32_1 = arith.constant 0 : i32
    return %c0_i32, %c0_i32_0 : i32, i32
  }
  func.func @transform_7(%arg0: i32) -> (i32, i32) {
    %c0_i32 = arith.constant 0 : i32
    %c0_i32_0 = arith.constant 0 : i32
    return %arg0, %c0_i32 : i32, i32
  }
}

</mosaic_0001>

<llo_original>
// kernel: ppo_forward.1
$region0: #{ppo_forward.1}
  #allocation0 [shape = 'u32[]', space=smem, size = 0x4, offset = 0x4, fixed_abs, tag = 'smem constant byte address 0x4 - core index']
  #allocation1 [shape = 'u32[72,128]{1,0:T(1,128)}', space=vmem, size = 0x9000, scoped, tag = 'internal scratch']
  %s0 = inlined_call_operand.vmem [shape: f32[8,128], index: 0, kind: input, shape index: {}]
  %s1 = inlined_call_operand.hbm [shape: bf16[128,128], index: 1, kind: input, shape index: {}]
  %s2 = inlined_call_operand.vmem [shape: f32[1,128], index: 2, kind: input, shape index: {}]
  %s3 = inlined_call_operand.hbm [shape: bf16[128,128], index: 3, kind: input, shape index: {}]
  %s4 = inlined_call_operand.vmem [shape: f32[1,128], index: 4, kind: input, shape index: {}]
  %s5 = inlined_call_operand.hbm [shape: bf16[128,128], index: 5, kind: input, shape index: {}]
  %s6 = inlined_call_operand.vmem [shape: f32[1,128], index: 6, kind: input, shape index: {}]
  %s7 = inlined_call_operand.hbm [shape: f32[8,128], index: 7, kind: output, shape index: {}]
  %s8 = sld [smem:[#allocation0]]
  $region50: #{ppo_forward.1} parent=0
    _
  %s10 = ssub.s32 1, %s8
  %s11 = scalar_select 0, %s10, %s8
  $region1: #{ppo_forward.1} parent=0
    #allocation2 [shape = 'u8[32768]{0}', space=vmem, size = 0x8000, scoped, tag = 'input window, operand 1, single buffered']
    #allocation3 [shape = 's32[1]{0}', space=sflag, size = 0x4, scoped, tag = 'scoped memory for ppo_forward.1']
    #allocation4 [shape = 's32[1]{0}', space=sflag, size = 0x4, scoped, tag = 'scoped memory for ppo_forward.1']
    #allocation5 [shape = 'u8[32768]{0}', space=vmem, size = 0x8000, scoped, tag = 'input window, operand 3, single buffered']
    #allocation6 [shape = 's32[1]{0}', space=sflag, size = 0x4, scoped, tag = 'scoped memory for ppo_forward.1']
    #allocation7 [shape = 'u8[32768]{0}', space=vmem, size = 0x8000, scoped, tag = 'input window, operand 5, single buffered']
    #allocation8 [shape = 'u8[4096]{0}', space=vmem, size = 0x1000, scoped, tag = 'output window, operand 0, single buffered']
    %12 = vsyncpa [#allocation3], 0
    %13 = vsyncpa [#allocation6], 0
    %14 = vsyncpa [#allocation4], 0
    // Predicated region
    $region2: #{ppo_forward.1} parent=1 // pred_check
      _
    $region3: #{ppo_forward.1} parent=1 // pred_check_branch
      %16 = sbr.rel (0) target = $region5
    $region4: #{ppo_forward.1} parent=1 // pred_region
      _
    $region5: #{ppo_forward.1} parent=1 // pred_fallthru
      _
    // Predicated region
    $region6: #{ppo_forward.1} parent=1 // pred_check
      _
    $region7: #{ppo_forward.1} parent=1 // pred_check_branch
      %18 = sbr.rel (0) target = $region9
    $region8: #{ppo_forward.1} parent=1 // pred_region
      %20 = vsyncadd [#allocation3], 0
      %s21 = sshll.u32 %s1, 4
      %s22 = int_to_ptr.hbm [resolvable:$true] %s21
      %s23 = sshll.u32 [#allocation2], 4
      %s24 = int_to_ptr.vmem [resolvable:$true] %s23
      %29 = dma.hbm_to_vmem [thread:$0]  %s22, 1024, %s24, [#allocation3], 64, 64, 4
    $region9: #{ppo_forward.1} parent=1 // pred_fallthru
      _
    // Predicated region
    $region10: #{ppo_forward.1} parent=1 // pred_check
      _
    $region11: #{ppo_forward.1} parent=1 // pred_check_branch
      %31 = sbr.rel (0) target = $region13
    $region12: #{ppo_forward.1} parent=1 // pred_region
      _
    $region13: #{ppo_forward.1} parent=1 // pred_fallthru
      _
    // Predicated region
    $region14: #{ppo_forward.1} parent=1 // pred_check
      _
    $region15: #{ppo_forward.1} parent=1 // pred_check_branch
      %33 = sbr.rel (0) target = $region17
    $region16: #{ppo_forward.1} parent=1 // pred_region
      %35 = vsyncadd [#allocation6], 0
      %s36 = sshll.u32 %s3, 4
      %s37 = int_to_ptr.hbm [resolvable:$true] %s36
      %s38 = sshll.u32 [#allocation5], 4
      %s39 = int_to_ptr.vmem [resolvable:$true] %s38
      %44 = dma.hbm_to_vmem [thread:$0]  %s37, 1024, %s39, [#allocation6], 64, 64, 4
    $region17: #{ppo_forward.1} parent=1 // pred_fallthru
      _
    // Predicated region
    $region18: #{ppo_forward.1} parent=1 // pred_check
      _
    $region19: #{ppo_forward.1} parent=1 // pred_check_branch
      %46 = sbr.rel (0) target = $region21
    $region20: #{ppo_forward.1} parent=1 // pred_region
      _
    $region21: #{ppo_forward.1} parent=1 // pred_fallthru
      _
    // Predicated region
    $region22: #{ppo_forward.1} parent=1 // pred_check
      _
    $region23: #{ppo_forward.1} parent=1 // pred_check_branch
      %48 = sbr.rel (0) target = $region25
    $region24: #{ppo_forward.1} parent=1 // pred_region
      %50 = vsyncadd [#allocation6], 0
      %s51 = sshll.u32 %s5, 4
      %s52 = int_to_ptr.hbm [resolvable:$true] %s51
      %s53 = sshll.u32 [#allocation7], 4
      %s54 = int_to_ptr.vmem [resolvable:$true] %s53
      %59 = dma.hbm_to_vmem [thread:$0]  %s52, 1024, %s54, [#allocation6], 64, 64, 4
    $region25: #{ppo_forward.1} parent=1 // pred_fallthru
      _
    // Predicated region
    $region26: #{ppo_forward.1} parent=1 // pred_check
      _
    $region27: #{ppo_forward.1} parent=1 // pred_check_branch
      %61 = sbr.rel (0) target = $region29
    $region28: #{ppo_forward.1} parent=1 // pred_region
      _
    $region29: #{ppo_forward.1} parent=1 // pred_fallthru
      _
    // Predicated region
    $region30: #{ppo_forward.1} parent=1 // pred_check
      _
    $region31: #{ppo_forward.1} parent=1 // pred_check_branch
      %63 = sbr.rel (0) target = $region33
    $region32: #{ppo_forward.1} parent=1 // pred_region
      %65 = dma.done [#allocation3], 1024
    $region33: #{ppo_forward.1} parent=1 // pred_fallthru
      _
    // Predicated region
    $region34: #{ppo_forward.1} parent=1 // pred_check
      _
    $region35: #{ppo_forward.1} parent=1 // pred_check_branch
      %67 = sbr.rel (0) target = $region37
    $region36: #{ppo_forward.1} parent=1 // pred_region
      %69 = dma.done [#allocation6], 1024
    $region37: #{ppo_forward.1} parent=1 // pred_fallthru
      _
    // Predicated region
    $region38: #{ppo_forward.1} parent=1 // pred_check
      _
    $region39: #{ppo_forward.1} parent=1 // pred_check_branch
      %71 = sbr.rel (0) target = $region41
    $region40: #{ppo_forward.1} parent=1 // pred_region
      %73 = dma.done [#allocation6], 1024
    $region41: #{ppo_forward.1} parent=1 // pred_fallthru
      _
    %v74 = vld [vmem:[%s0] sm:$0xff]
    %v75 = vpack.c.bf16 %v74, %v74
    %v76 = vld [vmem:[#allocation2] sm:$0xf]
    %v77 = vld [vmem:[#allocation2 + $0x4] sm:$0xf]
    %v78 = vld [vmem:[#allocation2 + $0x8] sm:$0xf]
    %v79 = vld [vmem:[#allocation2 + $0xc] sm:$0xf]
    %v80 = vld [vmem:[#allocation2 + $0x10] sm:$0xf]
    %v81 = vld [vmem:[#allocation2 + $0x14] sm:$0xf]
    %v82 = vld [vmem:[#allocation2 + $0x18] sm:$0xf]
    %v83 = vld [vmem:[#allocation2 + $0x1c] sm:$0xf]
    %v84 = vld [vmem:[#allocation2 + $0x20] sm:$0xf]
    %v85 = vld [vmem:[#allocation2 + $0x24] sm:$0xf]
    %v86 = vld [vmem:[#allocation2 + $0x28] sm:$0xf]
    %v87 = vld [vmem:[#allocation2 + $0x2c] sm:$0xf]
    %v88 = vld [vmem:[#allocation2 + $0x30] sm:$0xf]
    %v89 = vld [vmem:[#allocation2 + $0x34] sm:$0xf]
    %v90 = vld [vmem:[#allocation2 + $0x38] sm:$0xf]
    %v91 = vld [vmem:[#allocation2 + $0x3c] sm:$0xf]
    %v92 = vld [vmem:[%s2] sm:$0x1]
    %v94 = vperm.slane %v92, 0
    %v112 = vunpack.c.l.b16 %v76
    %v113 = vunpack.c.l.b16 %v77
    %v114 = vunpack.c.l.b16 %v78
    %v115 = vunpack.c.l.b16 %v79
    %v116 = vunpack.c.l.b16 %v80
    %v117 = vunpack.c.l.b16 %v81
    %v118 = vunpack.c.l.b16 %v82
    %v119 = vunpack.c.l.b16 %v83
    %v120 = vunpack.c.l.b16 %v84
    %v121 = vunpack.c.l.b16 %v85
    %v122 = vunpack.c.l.b16 %v86
    %v123 = vunpack.c.l.b16 %v87
    %v124 = vunpack.c.l.b16 %v88
    %v125 = vunpack.c.l.b16 %v89
    %v126 = vunpack.c.l.b16 %v90
    %v127 = vunpack.c.l.b16 %v91
    %v128 = vpack.c.b16 %v113, %v112
    %v129 = vpack.c.b16 %v115, %v114
    %v130 = vpack.c.b16 %v117, %v116
    %v131 = vpack.c.b16 %v119, %v118
    %v132 = vpack.c.b16 %v121, %v120
    %v133 = vpack.c.b16 %v123, %v122
    %v134 = vpack.c.b16 %v125, %v124
    %v135 = vpack.c.b16 %v127, %v126
    %144 = vmatpush.bf16.msra.mxu0 %v135
    %145 = vmatpush.bf16.msra.mxu0 %v134
    %146 = vmatpush.bf16.msra.mxu0 %v133
    %147 = vmatpush.bf16.msra.mxu0 %v132
    %148 = vmatpush.bf16.msra.mxu0 %v131
    %149 = vmatpush.bf16.msra.mxu0 %v130
    %150 = vmatpush.bf16.msra.mxu0 %v129
    %151 = vmatpush.bf16.msra.mxu0 %v128
    %152 = vmatmul.bf16.gmra.mxu0 %v75
    %v153 = vpop.f32.mrf.mxu0
    %v154 = vadd.f32 %v94, %v153
    %v155 = vpop.f32.mrf.mxu0
    %156 = vdwg.mxu0
    %v157 = vmax.f32 %v154, 0.0
    %v158 = vpack.c.bf16 %v157, %v157
    %v159 = vld [vmem:[#allocation5] sm:$0xf]
    %v160 = vld [vmem:[#allocation5 + $0x4] sm:$0xf]
    %v161 = vld [vmem:[#allocation5 + $0x8] sm:$0xf]
    %v162 = vld [vmem:[#allocation5 + $0xc] sm:$0xf]
    %v163 = vld [vmem:[#allocation5 + $0x10] sm:$0xf]
    %v164 = vld [vmem:[#allocation5 + $0x14] sm:$0xf]
    %v165 = vld [vmem:[#allocation5 + $0x18] sm:$0xf]
    %v166 = vld [vmem:[#allocation5 + $0x1c] sm:$0xf]
    %v167 = vld [vmem:[#allocation5 + $0x20] sm:$0xf]
    %v168 = vld [vmem:[#allocation5 + $0x24] sm:$0xf]
    %v169 = vld [vmem:[#allocation5 + $0x28] sm:$0xf]
    %v170 = vld [vmem:[#allocation5 + $0x2c] sm:$0xf]
    %v171 = vld [vmem:[#allocation5 + $0x30] sm:$0xf]
    %v172 = vld [vmem:[#allocation5 + $0x34] sm:$0xf]
    %v173 = vld [vmem:[#allocation5 + $0x38] sm:$0xf]
    %v174 = vld [vmem:[#allocation5 + $0x3c] sm:$0xf]
    %v175 = vld [vmem:[%s4] sm:$0x1]
    %v177 = vperm.slane %v175, 0
    %v195 = vunpack.c.l.b16 %v159
    %v196 = vunpack.c.l.b16 %v160
    %v197 = vunpack.c.l.b16 %v161
    %v198 = vunpack.c.l.b16 %v162
    %v199 = vunpack.c.l.b16 %v163
    %v200 = vunpack.c.l.b16 %v164
    %v201 = vunpack.c.l.b16 %v165
    %v202 = vunpack.c.l.b16 %v166
    %v203 = vunpack.c.l.b16 %v167
    %v204 = vunpack.c.l.b16 %v168
    %v205 = vunpack.c.l.b16 %v169
    %v206 = vunpack.c.l.b16 %v170
    %v207 = vunpack.c.l.b16 %v171
    %v208 = vunpack.c.l.b16 %v172
    %v209 = vunpack.c.l.b16 %v173
    %v210 = vunpack.c.l.b16 %v174
    %v211 = vpack.c.b16 %v196, %v195
    %v212 = vpack.c.b16 %v198, %v197
    %v213 = vpack.c.b16 %v200, %v199
    %v214 = vpack.c.b16 %v202, %v201
    %v215 = vpack.c.b16 %v204, %v203
    %v216 = vpack.c.b16 %v206, %v205
    %v217 = vpack.c.b16 %v208, %v207
    %v218 = vpack.c.b16 %v210, %v209
    %227 = vmatpush.bf16.msra.mxu0 %v218
    %228 = vmatpush.bf16.msra.mxu0 %v217
    %229 = vmatpush.bf16.msra.mxu0 %v216
    %230 = vmatpush.bf16.msra.mxu0 %v215
    %231 = vmatpush.bf16.msra.mxu0 %v214
    %232 = vmatpush.bf16.msra.mxu0 %v213
    %233 = vmatpush.bf16.msra.mxu0 %v212
    %234 = vmatpush.bf16.msra.mxu0 %v211
    %235 = vmatmul.bf16.gmra.mxu0 %v158
    %v236 = vpop.f32.mrf.mxu0
    %v237 = vadd.f32 %v177, %v236
    %v238 = vpop.f32.mrf.mxu0
    %239 = vdwg.mxu0
    %v240 = vmax.f32 %v237, 0.0
    %v241 = vpack.c.bf16 %v240, %v240
    %v242 = vld [vmem:[#allocation7] sm:$0xf]
    %v243 = vld [vmem:[#allocation7 + $0x4] sm:$0xf]
    %v244 = vld [vmem:[#allocation7 + $0x8] sm:$0xf]
    %v245 = vld [vmem:[#allocation7 + $0xc] sm:$0xf]
    %v246 = vld [vmem:[#allocation7 + $0x10] sm:$0xf]
    %v247 = vld [vmem:[#allocation7 + $0x14] sm:$0xf]
    %v248 = vld [vmem:[#allocation7 + $0x18] sm:$0xf]
    %v249 = vld [vmem:[#allocation7 + $0x1c] sm:$0xf]
    %v250 = vld [vmem:[#allocation7 + $0x20] sm:$0xf]
    %v251 = vld [vmem:[#allocation7 + $0x24] sm:$0xf]
    %v252 = vld [vmem:[#allocation7 + $0x28] sm:$0xf]
    %v253 = vld [vmem:[#allocation7 + $0x2c] sm:$0xf]
    %v254 = vld [vmem:[#allocation7 + $0x30] sm:$0xf]
    %v255 = vld [vmem:[#allocation7 + $0x34] sm:$0xf]
    %v256 = vld [vmem:[#allocation7 + $0x38] sm:$0xf]
    %v257 = vld [vmem:[#allocation7 + $0x3c] sm:$0xf]
    %v258 = vld [vmem:[%s6] sm:$0x1]
    %v260 = vperm.slane %v258, 0
    %v278 = vunpack.c.l.b16 %v242
    %v279 = vunpack.c.l.b16 %v243
    %v280 = vunpack.c.l.b16 %v244
    %v281 = vunpack.c.l.b16 %v245
    %v282 = vunpack.c.l.b16 %v246
    %v283 = vunpack.c.l.b16 %v247
    %v284 = vunpack.c.l.b16 %v248
    %v285 = vunpack.c.l.b16 %v249
    %v286 = vunpack.c.l.b16 %v250
    %v287 = vunpack.c.l.b16 %v251
    %v288 = vunpack.c.l.b16 %v252
    %v289 = vunpack.c.l.b16 %v253
    %v290 = vunpack.c.l.b16 %v254
    %v291 = vunpack.c.l.b16 %v255
    %v292 = vunpack.c.l.b16 %v256
    %v293 = vunpack.c.l.b16 %v257
    %v294 = vpack.c.b16 %v279, %v278
    %v295 = vpack.c.b16 %v281, %v280
    %v296 = vpack.c.b16 %v283, %v282
    %v297 = vpack.c.b16 %v285, %v284
    %v298 = vpack.c.b16 %v287, %v286
    %v299 = vpack.c.b16 %v289, %v288
    %v300 = vpack.c.b16 %v291, %v290
    %v301 = vpack.c.b16 %v293, %v292
    %310 = vmatpush.bf16.msra.mxu0 %v301
    %311 = vmatpush.bf16.msra.mxu0 %v300
    %312 = vmatpush.bf16.msra.mxu0 %v299
    %313 = vmatpush.bf16.msra.mxu0 %v298
    %314 = vmatpush.bf16.msra.mxu0 %v297
    %315 = vmatpush.bf16.msra.mxu0 %v296
    %316 = vmatpush.bf16.msra.mxu0 %v295
    %317 = vmatpush.bf16.msra.mxu0 %v294
    %318 = vmatmul.bf16.gmra.mxu0 %v241
    %v319 = vpop.f32.mrf.mxu0
    %v320 = vadd.f32 %v260, %v319
    %v321 = vpop.f32.mrf.mxu0
    %322 = vdwg.mxu0
    %323 = vmax.xlane.f32.xlu0 %v320
    %v324 = vpop.xlane.xlu0 %323
    %v325 = vsub.f32 %v320, %v324
    %v326 = vmul.f32 %v325, 1.442695
    %v327 = vpow.pop %v326
    %328 = vadd.xlane.f32.xlu0 %v327
    %v329 = vpop.xlane.xlu0 %328
    %v330 = vrcp.pop %v329
    %v331 = vmul.f32 %v329, %v330
    %v332 = vsub.f32 1.0, %v331
    %v333 = vmul.f32 %v330, %v332
    %v334 = vadd.f32 %v330, %v333
    %vm335 = vweird.f32 %v329
    %vm336 = vweird.f32 %v330
    %vm337 = vmor %vm335, %vm336
    %v338 = vsel %vm337, %v330, %v334
    %v339 = vand.u32 2147483647, %v329
    %vm340 = vcmp.eq.f32.partialorder %v339, 8.507059e+37
    %v341 = vand.u32 %v329, 2147483648
    %v342 = vor.u32 1.1754944e-38, %v341
    %v343 = vsel %vm340, %v342, %v338
    %v344 = vmul.f32 %v327, %v343
    %345 = vst [vmem:[#allocation8] sm:$0xff] %v344
    // Predicated region
    $region42: #{ppo_forward.1} parent=1 // pred_check
      _
    $region43: #{ppo_forward.1} parent=1 // pred_check_branch
      %347 = sbr.rel (0) target = $region45
    $region44: #{ppo_forward.1} parent=1 // pred_region
      %349 = vsyncadd [#allocation4], 0
      %s351 = sshll.u32 [#allocation8], 4
      %s352 = int_to_ptr.vmem [resolvable:$true] %s351
      %s353 = sshll.u32 %s7, 4
      %s354 = int_to_ptr.hbm [resolvable:$true] %s353
      %356 = dma.vmem_to_hbm [thread:$0]  %s352, 128, %s354, [#allocation4]
    $region45: #{ppo_forward.1} parent=1 // pred_fallthru
      _
    // Predicated region
    $region46: #{ppo_forward.1} parent=1 // pred_check
      _
    $region47: #{ppo_forward.1} parent=1 // pred_check_branch
      %358 = sbr.rel (0) target = $region49
    $region48: #{ppo_forward.1} parent=1 // pred_region
      %360 = dma.done [#allocation4], 128
    $region49: #{ppo_forward.1} parent=1 // pred_fallthru
      _
    %361 = vsyncpa [#allocation3], 1
    %362 = vsyncpa [#allocation6], 1
    %363 = vsyncpa [#allocation4], 1

</llo_original>
